<compile_context>
chip_gen: v7x
topology: tpu7x:2x2x1
jax: 0.10.0
libtpu: 0.0.40
codegen_flags: <defaults>
</compile_context>

<pallas_src>
import numpy as np
import jax
import jax.numpy as jnp
from jax.experimental import pallas as pl
from jax.experimental.pallas import tpu as pltpu

N_QUBITS = 4
_MAX_FACTORS = 4        # a Pauli string on 4 qubits has at most 4 factors


# --------------------------------------------------------------------------
# Static symbolic Pauli algebra (runs once at import, plain Python):
# pull each measured Z/X/Y back through the CNOT ring
# CNOT(0->1), CNOT(1->2), CNOT(2->3), CNOT(3->0).
# --------------------------------------------------------------------------
_PAULI_MUL = {
    ('X', 'Y'): (1j, 'Z'), ('Y', 'Z'): (1j, 'X'), ('Z', 'X'): (1j, 'Y'),
    ('Y', 'X'): (-1j, 'Z'), ('Z', 'Y'): (-1j, 'X'), ('X', 'Z'): (-1j, 'Y'),
}


def _pauli_mul(a, b):
    if a == 'I':
        return 1, b
    if b == 'I':
        return 1, a
    if a == b:
        return 1, 'I'
    return _PAULI_MUL[(a, b)]


def _cnot_conj_factor(p, pos, c, t):
    """CNOT(c,t) . P_pos . CNOT(c,t) for a single-qubit Pauli p on `pos`."""
    if pos == c:
        if p == 'X':
            return [(c, 'X'), (t, 'X')]
        if p == 'Y':
            return [(c, 'Y'), (t, 'X')]
        return [(pos, p)]                       # Z on control unchanged
    if pos == t:
        if p == 'Z':
            return [(c, 'Z'), (t, 'Z')]
        if p == 'Y':
            return [(c, 'Z'), (t, 'Y')]
        return [(pos, p)]                       # X on target unchanged
    return [(pos, p)]


def _conj_string_by_cnot(phase, string, c, t):
    """Conjugate a Pauli string (dict qubit->pauli, non-identity) by CNOT(c,t)."""
    new_phase = phase
    new = {}
    for q in sorted(string):                    # fixed factor order
        for qq, pp in _cnot_conj_factor(string[q], q, c, t):
            cur = new.get(qq, 'I')
            ph, res = _pauli_mul(cur, pp)       # multiply in factor order
            new_phase *= ph
            if res == 'I':
                new.pop(qq, None)
            else:
                new[qq] = res
    return new_phase, new


def _compute_ring_pullback():
    ring = [(i, (i + 1) % N_QUBITS) for i in range(N_QUBITS)]
    out = []
    for p in ('Z', 'X', 'Y'):                   # p-major, qubit-minor ordering
        for q in range(N_QUBITS):
            phase, string = complex(1.0), {q: p}
            for c, t in reversed(ring):         # C^dag P C: conjugate G4..G1
                phase, string = _conj_string_by_cnot(phase, string, c, t)
            assert abs(phase.imag) < 1e-9 and abs(abs(phase.real) - 1.0) < 1e-9
            sign = 1.0 if phase.real > 0 else -1.0
            out.append((sign, tuple(sorted(string.items()))))
    return out


_RING_PULLBACK = _compute_ring_pullback()       # 12 entries: (sign, ((q, P), ...))


def _build_select_mats():
    """Static factor-selection matrices for the select-by-matmul pullback.

    chunks[:, m*12 + k] must equal the m-th single-qubit factor of Pauli
    string k (or 1.0 if the string has fewer than m+1 factors), where the
    in-kernel components are sZ = t*ra (note: <Z> = -t*ra, the minus sign is
    folded into gz), xC = ra*rb, yC = t2*ra*rb.
    """
    ncol = _MAX_FACTORS * 12
    gz = np.zeros((N_QUBITS, ncol), np.float32)
    gx = np.zeros((N_QUBITS, ncol), np.float32)
    gy = np.zeros((N_QUBITS, ncol), np.float32)
    gb = np.zeros((1, ncol), np.float32)
    for k, (_sign, factors) in enumerate(_RING_PULLBACK):
        assert 1 <= len(factors) <= _MAX_FACTORS
        for m in range(_MAX_FACTORS):
            col = m * 12 + k
            if m < len(factors):
                q, p = factors[m]
                if p == 'Z':
                    gz[q, col] = -1.0           # minus sign of <Z> = -t*ra
                elif p == 'X':
                    gx[q, col] = 1.0
                else:
                    gy[q, col] = 1.0
            else:
                gb[0, col] = 1.0                # missing factor -> 1.0
    return gz, gx, gy, gb


_GZ, _GX, _GY, _GB = _build_select_mats()


# --------------------------------------------------------------------------
# Pallas kernel: one batch tile per grid step.
# --------------------------------------------------------------------------
def qlstmf_kernel(h_ref, x_ref, c_ref, wh_ref, wx_ref, bin_ref,
                  gz_ref, gx_ref, gy_ref, gb_ref, wg_ref, bout_ref,
                  hout_ref, cout_ref):
    hsz = c_ref.shape[1]

    # clayer_in: y = h @ Wh + x @ Wx + b_in  -> (TB, 4).  Two MXU dots
    # (no wrapper-side concat of [h, x]).
    y = (jnp.dot(h_ref[...], wh_ref[...], preferred_element_type=jnp.float32)
         + jnp.dot(x_ref[...], wx_ref[...], preferred_element_type=jnp.float32)
         + bin_ref[...])

    # Single-qubit expectation components of RZ(atan y^2) RY(atan y) H |0>:
    #   <Z> = -t*ra (minus folded into gz),  <X> = ra*rb,  <Y> = t^2*ra*rb
    # with ra = rsqrt(1+t^2), rb = rsqrt(1+t^4).  t^2 is clamped so t^4
    # stays finite in f32; <Z> keeps its exact sign behaviour.
    t = y
    t2 = t * t
    ra = jax.lax.rsqrt(1.0 + t2)
    t2c = jnp.minimum(t2, 1.0e18)
    rb = jax.lax.rsqrt(1.0 + t2c * t2c)
    sZ = t * ra
    xC = ra * rb
    yC = xC * t2c

    # Heisenberg-folded CNOT ring, select-by-matmul:
    # chunks[:, m*12+k] = m-th factor of Pauli string k (1.0 where absent).
    chunks = (jnp.dot(sZ, gz_ref[...], preferred_element_type=jnp.float32)
              + jnp.dot(xC, gx_ref[...], preferred_element_type=jnp.float32)
              + jnp.dot(yC, gy_ref[...], preferred_element_type=jnp.float32)
              + gb_ref[...])                                      # (TB, 48)
    pauli = ((chunks[:, 0:12] * chunks[:, 12:24])
             * (chunks[:, 24:36] * chunks[:, 36:48]))             # (TB, 12)

    # clayer_out for all 4 gates in one MXU matmul.  Gate order [f, i, o | g];
    # f/i/o columns & biases pre-scaled by 0.5 so one tanh over the dense
    # (TB, 4H) block yields every nonlinearity:
    #   sigmoid(u) = 0.5 * tanh(u/2) + 0.5.
    z = jnp.dot(pauli, wg_ref[...], preferred_element_type=jnp.float32)
    z = z + bout_ref[...]                                         # (TB, 4H)
    tz = jnp.tanh(z)
    sio = 0.5 * tz[:, :3 * hsz] + 0.5                             # (TB, 3H)
    f_t = sio[:, 0 * hsz:1 * hsz]
    i_t = sio[:, 1 * hsz:2 * hsz]
    o_t = sio[:, 2 * hsz:3 * hsz]
    g_t = tz[:, 3 * hsz:4 * hsz]

    c_t = f_t * c_ref[...] + i_t * g_t
    hout_ref[...] = o_t * jnp.tanh(c_t)
    cout_ref[...] = c_t


# --------------------------------------------------------------------------
# Wrapper: parameter glue (pure XLA on tiny arrays) + pallas_call.
# --------------------------------------------------------------------------
def _round_up(v, m):
    return -(-v // m) * m


def qlstmf_forward(x, h_prev, c_prev, params, *, tile_b=2048):
    """x: (B, 1, F); h_prev/c_prev: (B, H). Returns (outputs, (h_t, c_t))."""
    B, S, F = x.shape
    assert S == 1, "QLSTMf.forward squeezes dim 1 -> seq length must be 1"
    H = params["W_out"].shape[0]

    x_t = x[:, 0, :].astype(jnp.float32)
    h_prev = h_prev.astype(jnp.float32)
    c_prev = c_prev.astype(jnp.float32)
    W_in = params["W_in"].astype(jnp.float32)      # (4, H+F)  (h cols first)
    b_in = params["b_in"].astype(jnp.float32)      # (4,)
    W_out = params["W_out"].astype(jnp.float32)    # (H, 4)
    b_out = params["b_out"].astype(jnp.float32)    # (H,)
    vqc = params["vqc"].astype(jnp.float32)        # (4 gates [f,i,g,o], 1, 3, 4)

    # Heisenberg fold of trainable RX(a),RY(b),RZ(c) before <Z>:
    #   <Z>_meas = cos a cos b <Z> - sin b <X> + cos b sin a <Y>
    a = vqc[:, 0, 0, :]
    b = vqc[:, 0, 1, :]                            # RZ angle drops out
    coef = jnp.stack([jnp.cos(a) * jnp.cos(b),     # <Z> coefficient
                      -jnp.sin(b),                 # <X> coefficient
                      jnp.cos(b) * jnp.sin(a)],    # <Y> coefficient
                     axis=1)                       # (4 gates, 3, 4 qubits)
    coef_kg = coef.reshape(4, 12).T                # (12, gate): row k = p*4+q

    # Gate reorder [forget, input, output | update] + sigmoid-as-tanh scaling.
    gate_perm = jnp.array([0, 1, 3, 2])
    gate_scale = jnp.array([0.5, 0.5, 0.5, 1.0], jnp.float32)
    coef_kg = coef_kg[:, gate_perm] * gate_scale[None, :]

    signs = jnp.asarray([s for s, _ in _RING_PULLBACK], jnp.float32)   # (12,)
    w_sel = jnp.tile(W_out.T, (3, 1))              # (12, H): row k -> W_out[:, k%4]
    wg = (signs[:, None, None] * coef_kg[:, :, None]
          * w_sel[:, None, :]).reshape(12, 4 * H)  # (12, 4H)
    bout = (gate_scale[:, None] * b_out[None, :]).reshape(1, 4 * H)

    wh = W_in[:, :H].T                             # (H, 4)
    wx = W_in[:, H:].T                             # (F, 4)
    bin2 = b_in.reshape(1, 4)

    # Batch tiling: multiple of 8 sublanes, >=2 grid steps when batch allows
    # (v7x megacore), minimal padding, big tiles to amortize grid overhead.
    B8 = _round_up(B, 8)
    if B8 >= 16:
        n_tiles = max(2, -(-B8 // int(tile_b)))
        TB = _round_up(-(-B8 // n_tiles), 8)
    else:
        TB = B8
    Bp = _round_up(B, TB)

    if Bp != B:
        hp = jnp.pad(h_prev, ((0, Bp - B), (0, 0)))
        xp = jnp.pad(x_t, ((0, Bp - B), (0, 0)))
        cp = jnp.pad(c_prev, ((0, Bp - B), (0, 0)))
    else:
        hp, xp, cp = h_prev, x_t, c_prev

    h_t, c_t = pl.pallas_call(
        qlstmf_kernel,
        out_shape=(jax.ShapeDtypeStruct((Bp, H), jnp.float32),
                   jax.ShapeDtypeStruct((Bp, H), jnp.float32)),
        grid=(Bp // TB,),
        in_specs=[
            pl.BlockSpec((TB, H), lambda i: (i, 0)),           # h_prev
            pl.BlockSpec((TB, F), lambda i: (i, 0)),           # x_t
            pl.BlockSpec((TB, H), lambda i: (i, 0)),           # c_prev
            pl.BlockSpec((H, 4), lambda i: (0, 0)),            # Wh
            pl.BlockSpec((F, 4), lambda i: (0, 0)),            # Wx
            pl.BlockSpec((1, 4), lambda i: (0, 0)),            # b_in
            pl.BlockSpec((N_QUBITS, _MAX_FACTORS * 12), lambda i: (0, 0)),  # Gz
            pl.BlockSpec((N_QUBITS, _MAX_FACTORS * 12), lambda i: (0, 0)),  # Gx
            pl.BlockSpec((N_QUBITS, _MAX_FACTORS * 12), lambda i: (0, 0)),  # Gy
            pl.BlockSpec((1, _MAX_FACTORS * 12), lambda i: (0, 0)),         # Gbias
            pl.BlockSpec((12, 4 * H), lambda i: (0, 0)),       # folded WG
            pl.BlockSpec((1, 4 * H), lambda i: (0, 0)),        # folded b_out
        ],
        out_specs=[pl.BlockSpec((TB, H), lambda i: (i, 0)),
                   pl.BlockSpec((TB, H), lambda i: (i, 0))],
        compiler_params=pltpu.CompilerParams(
            dimension_semantics=("parallel",)),
    )(hp, xp, cp, wh, wx, bin2,
      jnp.asarray(_GZ), jnp.asarray(_GX), jnp.asarray(_GY), jnp.asarray(_GB),
      wg, bout)

    h_t = h_t[:B]
    c_t = c_t[:B]
    outputs = h_t[:, None, :]
    return outputs, (h_t, c_t)


# ----------------------- independent numpy reference -----------------------
def _ref_forward_numpy(x, h_prev, c_prev, params):
    x = np.asarray(x, np.float64)
    h_prev = np.asarray(h_prev, np.float64)
    c_prev = np.asarray(c_prev, np.float64)
    W_in = np.asarray(params["W_in"], np.float64)
    b_in = np.asarray(params["b_in"], np.float64)
    W_out = np.asarray(params["W_out"], np.float64)
    b_out = np.asarray(params["b_out"], np.float64)
    vqc_w = np.asarray(params["vqc"], np.float64)

    I2 = np.eye(2, dtype=complex)
    X = np.array([[0, 1], [1, 0]], complex)
    Z = np.diag([1, -1]).astype(complex)
    Hd = np.array([[1, 1], [1, -1]], complex) / np.sqrt(2)

    def RX(t): return np.array([[np.cos(t / 2), -1j * np.sin(t / 2)],
                                [-1j * np.sin(t / 2), np.cos(t / 2)]])
    def RY(t): return np.array([[np.cos(t / 2), -np.sin(t / 2)],
                                [np.sin(t / 2), np.cos(t / 2)]], complex)
    def RZ(t): return np.diag([np.exp(-1j * t / 2), np.exp(1j * t / 2)])

    def kron_all(ops):
        M = ops[0]
        for o in ops[1:]:
            M = np.kron(M, o)
        return M

    def one(U, q):
        ops = [I2] * 4
        ops[q] = U
        return kron_all(ops)

    def cnot(c, t):
        P0 = np.diag([1, 0]).astype(complex)
        P1 = np.diag([0, 1]).astype(complex)
        ops0 = [I2] * 4; ops0[c] = P0
        ops1 = [I2] * 4; ops1[c] = P1; ops1[t] = X
        return kron_all(ops0) + kron_all(ops1)

    def vqc(yb, w):  # yb (4,), w (1,3,4)
        st = np.zeros(16, complex); st[0] = 1.0
        for q in range(4):
            st = one(Hd, q) @ st
            st = one(RY(np.arctan(yb[q])), q) @ st
            st = one(RZ(np.arctan(yb[q] ** 2)), q) @ st
        for i in range(4):
            st = cnot(i, (i + 1) % 4) @ st
        for i in range(4):
            st = one(RX(w[0, 0, i]), i) @ st
            st = one(RY(w[0, 1, i]), i) @ st
            st = one(RZ(w[0, 2, i]), i) @ st
        return np.array([np.real(np.conj(st) @ (one(Z, i) @ st)) for i in range(4)])

    v = np.concatenate([h_prev, x[:, 0, :]], axis=1)
    y = v @ W_in.T + b_in
    gates = []
    for g in range(4):
        qexp = np.stack([vqc(y[bi], vqc_w[g]) for bi in range(y.shape[0])])
        gates.append(qexp @ W_out.T + b_out)
    sig = lambda t: 1.0 / (1.0 + np.exp(-t))
    f, i_, gg, o = sig(gates[0]), sig(gates[1]), np.tanh(gates[2]), sig(gates[3])
    c_t = f * c_prev + i_ * gg
    h_t = o * np.tanh(c_t)
    return h_t, c_t


if __name__ == "__main__":
    key = jax.random.PRNGKey(0)
    B, S, F, H = 8, 1, 16, 32
    ks = jax.random.split(key, 8)
    x = jax.random.normal(ks[0], (B, S, F), jnp.float32)
    params = {
        "W_in": jax.random.normal(ks[1], (N_QUBITS, H + F), jnp.float32) * 0.2,
        "b_in": jax.random.normal(ks[2], (N_QUBITS,), jnp.float32) * 0.1,
        "vqc": jax.random.uniform(ks[3], (4, 1, 3, N_QUBITS), jnp.float32,
                                  0.0, 2.0 * np.pi),
        "W_out": jax.random.normal(ks[4], (H, N_QUBITS), jnp.float32) * 0.3,
        "b_out": jax.random.normal(ks[5], (H,), jnp.float32) * 0.1,
    }
    h0 = jax.random.normal(ks[6], (B, H), jnp.float32) * 0.5
    c0 = jax.random.normal(ks[7], (B, H), jnp.float32) * 0.5

    outputs, (h_t, c_t) = qlstmf_forward(x, h0, c0, params)
    jax.block_until_ready((outputs, h_t, c_t))

    h_ref, c_ref = _ref_forward_numpy(np.asarray(x), np.asarray(h0),
                                      np.asarray(c0),
                                      {k: np.asarray(v) for k, v in params.items()})
    np.testing.assert_allclose(np.asarray(h_t), h_ref, rtol=2e-3, atol=2e-3)
    np.testing.assert_allclose(np.asarray(c_t), c_ref, rtol=2e-3, atol=2e-3)
    assert outputs.shape == (B, 1, H)
    print("KERNEL_OK")
</pallas_src>

<mosaic_0001>
module attributes {stable_mosaic.version = 11 : i64} {
  func.func @qlstmf_kernel(%arg0: i32, %arg1: memref<8x32xf32, #tpu.memory_space<vmem>>, %arg2: memref<8x16xf32, #tpu.memory_space<vmem>>, %arg3: memref<8x32xf32, #tpu.memory_space<vmem>>, %arg4: memref<32x4xf32, #tpu.memory_space<vmem>>, %arg5: memref<16x4xf32, #tpu.memory_space<vmem>>, %arg6: memref<1x4xf32, #tpu.memory_space<vmem>>, %arg7: memref<4x48xf32, #tpu.memory_space<vmem>>, %arg8: memref<4x48xf32, #tpu.memory_space<vmem>>, %arg9: memref<4x48xf32, #tpu.memory_space<vmem>>, %arg10: memref<1x48xf32, #tpu.memory_space<vmem>>, %arg11: memref<12x128xf32, #tpu.memory_space<vmem>>, %arg12: memref<1x128xf32, #tpu.memory_space<vmem>>, %arg13: memref<8x32xf32, #tpu.memory_space<vmem>>, %arg14: memref<8x32xf32, #tpu.memory_space<vmem>>) attributes {dimension_semantics = [#tpu.dimension_semantics<parallel>], iteration_bounds = array<i64: 1>, scalar_prefetch = 0 : i64, scratch_operands = 0 : i64, tpu.core_type = #tpu.core_type<tc>, window_params = [{transform_indices = @transform_0, window_bounds = array<i64: 8, 32>}, {transform_indices = @transform_1, window_bounds = array<i64: 8, 16>}, {transform_indices = @transform_2, window_bounds = array<i64: 8, 32>}, {pipeline_mode = #tpu.pipeline_mode<synchronous>, transform_indices = @transform_3, window_bounds = array<i64: 32, 4>}, {pipeline_mode = #tpu.pipeline_mode<synchronous>, transform_indices = @transform_4, window_bounds = array<i64: 16, 4>}, {pipeline_mode = #tpu.pipeline_mode<synchronous>, transform_indices = @transform_5, window_bounds = array<i64: 1, 4>}, {pipeline_mode = #tpu.pipeline_mode<synchronous>, transform_indices = @transform_6, window_bounds = array<i64: 4, 48>}, {pipeline_mode = #tpu.pipeline_mode<synchronous>, transform_indices = @transform_7, window_bounds = array<i64: 4, 48>}, {pipeline_mode = #tpu.pipeline_mode<synchronous>, transform_indices = @transform_8, window_bounds = array<i64: 4, 48>}, {pipeline_mode = #tpu.pipeline_mode<synchronous>, transform_indices = @transform_9, window_bounds = array<i64: 1, 48>}, {pipeline_mode = #tpu.pipeline_mode<synchronous>, transform_indices = @transform_10, window_bounds = array<i64: 12, 128>}, {pipeline_mode = #tpu.pipeline_mode<synchronous>, transform_indices = @transform_11, window_bounds = array<i64: 1, 128>}, {transform_indices = @transform_12, window_bounds = array<i64: 8, 32>}, {transform_indices = @transform_13, window_bounds = array<i64: 8, 32>}]} {
    %c0 = arith.constant 0 : index
    %c0_0 = arith.constant 0 : index
    %0 = vector.load %arg1[%c0, %c0_0] : memref<8x32xf32, #tpu.memory_space<vmem>>, vector<8x32xf32>
    %c0_1 = arith.constant 0 : index
    %c0_2 = arith.constant 0 : index
    %1 = vector.load %arg4[%c0_1, %c0_2] : memref<32x4xf32, #tpu.memory_space<vmem>>, vector<32x4xf32>
    %cst = arith.constant dense<0.000000e+00> : vector<8x4xf32>
    %2 = tpu.matmul %0, %1, %cst {dimension_numbers = #tpu.dot_dimension_numbers<[1], [0], [0], [1], [0, 0, 1, 1], [], []>} : vector<8x32xf32>, vector<32x4xf32>, vector<8x4xf32> -> vector<8x4xf32>
    %c0_3 = arith.constant 0 : index
    %c0_4 = arith.constant 0 : index
    %3 = vector.load %arg2[%c0_3, %c0_4] : memref<8x16xf32, #tpu.memory_space<vmem>>, vector<8x16xf32>
    %c0_5 = arith.constant 0 : index
    %c0_6 = arith.constant 0 : index
    %4 = vector.load %arg5[%c0_5, %c0_6] : memref<16x4xf32, #tpu.memory_space<vmem>>, vector<16x4xf32>
    %cst_7 = arith.constant dense<0.000000e+00> : vector<8x4xf32>
    %5 = tpu.matmul %3, %4, %cst_7 {dimension_numbers = #tpu.dot_dimension_numbers<[1], [0], [0], [1], [0, 0, 1, 1], [], []>} : vector<8x16xf32>, vector<16x4xf32>, vector<8x4xf32> -> vector<8x4xf32>
    %6 = arith.addf %2, %5 : vector<8x4xf32>
    %c0_8 = arith.constant 0 : index
    %c0_9 = arith.constant 0 : index
    %7 = vector.load %arg6[%c0_8, %c0_9] : memref<1x4xf32, #tpu.memory_space<vmem>>, vector<1x4xf32>
    %8 = vector.broadcast %7 : vector<1x4xf32> to vector<8x4xf32>
    %9 = arith.addf %6, %8 : vector<8x4xf32>
    %10 = arith.mulf %9, %9 : vector<8x4xf32>
    %cst_10 = arith.constant 1.000000e+00 : f32
    %11 = vector.broadcast %cst_10 : f32 to vector<8x4xf32>
    %12 = arith.addf %11, %10 : vector<8x4xf32>
    %13 = math.rsqrt %12 : vector<8x4xf32>
    %cst_11 = arith.constant 9.99999984E+17 : f32
    %14 = vector.broadcast %cst_11 : f32 to vector<8x4xf32>
    %15 = arith.minimumf %10, %14 : vector<8x4xf32>
    %16 = arith.mulf %15, %15 : vector<8x4xf32>
    %cst_12 = arith.constant 1.000000e+00 : f32
    %17 = vector.broadcast %cst_12 : f32 to vector<8x4xf32>
    %18 = arith.addf %17, %16 : vector<8x4xf32>
    %19 = math.rsqrt %18 : vector<8x4xf32>
    %20 = arith.mulf %9, %13 : vector<8x4xf32>
    %21 = arith.mulf %13, %19 : vector<8x4xf32>
    %22 = arith.mulf %21, %15 : vector<8x4xf32>
    %c0_13 = arith.constant 0 : index
    %c0_14 = arith.constant 0 : index
    %23 = vector.load %arg7[%c0_13, %c0_14] : memref<4x48xf32, #tpu.memory_space<vmem>>, vector<4x48xf32>
    %cst_15 = arith.constant dense<0.000000e+00> : vector<8x48xf32>
    %24 = tpu.matmul %20, %23, %cst_15 {dimension_numbers = #tpu.dot_dimension_numbers<[1], [0], [0], [1], [0, 0, 1, 1], [], []>} : vector<8x4xf32>, vector<4x48xf32>, vector<8x48xf32> -> vector<8x48xf32>
    %c0_16 = arith.constant 0 : index
    %c0_17 = arith.constant 0 : index
    %25 = vector.load %arg8[%c0_16, %c0_17] : memref<4x48xf32, #tpu.memory_space<vmem>>, vector<4x48xf32>
    %cst_18 = arith.constant dense<0.000000e+00> : vector<8x48xf32>
    %26 = tpu.matmul %21, %25, %cst_18 {dimension_numbers = #tpu.dot_dimension_numbers<[1], [0], [0], [1], [0, 0, 1, 1], [], []>} : vector<8x4xf32>, vector<4x48xf32>, vector<8x48xf32> -> vector<8x48xf32>
    %27 = arith.addf %24, %26 : vector<8x48xf32>
    %c0_19 = arith.constant 0 : index
    %c0_20 = arith.constant 0 : index
    %28 = vector.load %arg9[%c0_19, %c0_20] : memref<4x48xf32, #tpu.memory_space<vmem>>, vector<4x48xf32>
    %cst_21 = arith.constant dense<0.000000e+00> : vector<8x48xf32>
    %29 = tpu.matmul %22, %28, %cst_21 {dimension_numbers = #tpu.dot_dimension_numbers<[1], [0], [0], [1], [0, 0, 1, 1], [], []>} : vector<8x4xf32>, vector<4x48xf32>, vector<8x48xf32> -> vector<8x48xf32>
    %30 = arith.addf %27, %29 : vector<8x48xf32>
    %c0_22 = arith.constant 0 : index
    %c0_23 = arith.constant 0 : index
    %31 = vector.load %arg10[%c0_22, %c0_23] : memref<1x48xf32, #tpu.memory_space<vmem>>, vector<1x48xf32>
    %32 = vector.broadcast %31 : vector<1x48xf32> to vector<8x48xf32>
    %33 = arith.addf %30, %32 : vector<8x48xf32>
    %34 = vector.extract_strided_slice %33 {offsets = [0, 0], sizes = [8, 12], strides = [1, 1]} : vector<8x48xf32> to vector<8x12xf32>
    %35 = vector.extract_strided_slice %33 {offsets = [0, 12], sizes = [8, 12], strides = [1, 1]} : vector<8x48xf32> to vector<8x12xf32>
    %36 = arith.mulf %34, %35 : vector<8x12xf32>
    %37 = vector.extract_strided_slice %33 {offsets = [0, 24], sizes = [8, 12], strides = [1, 1]} : vector<8x48xf32> to vector<8x12xf32>
    %38 = vector.extract_strided_slice %33 {offsets = [0, 36], sizes = [8, 12], strides = [1, 1]} : vector<8x48xf32> to vector<8x12xf32>
    %39 = arith.mulf %37, %38 : vector<8x12xf32>
    %40 = arith.mulf %36, %39 : vector<8x12xf32>
    %c0_24 = arith.constant 0 : index
    %c0_25 = arith.constant 0 : index
    %41 = vector.load %arg11[%c0_24, %c0_25] : memref<12x128xf32, #tpu.memory_space<vmem>>, vector<12x128xf32>
    %cst_26 = arith.constant dense<0.000000e+00> : vector<8x128xf32>
    %42 = tpu.matmul %40, %41, %cst_26 {dimension_numbers = #tpu.dot_dimension_numbers<[1], [0], [0], [1], [0, 0, 1, 1], [], []>} : vector<8x12xf32>, vector<12x128xf32>, vector<8x128xf32> -> vector<8x128xf32>
    %c0_27 = arith.constant 0 : index
    %c0_28 = arith.constant 0 : index
    %43 = vector.load %arg12[%c0_27, %c0_28] : memref<1x128xf32, #tpu.memory_space<vmem>>, vector<1x128xf32>
    %44 = vector.broadcast %43 : vector<1x128xf32> to vector<8x128xf32>
    %45 = arith.addf %42, %44 : vector<8x128xf32>
    %46 = math.tanh %45 : vector<8x128xf32>
    %47 = vector.extract_strided_slice %46 {offsets = [0, 0], sizes = [8, 96], strides = [1, 1]} : vector<8x128xf32> to vector<8x96xf32>
    %cst_29 = arith.constant 5.000000e-01 : f32
    %48 = vector.broadcast %cst_29 : f32 to vector<8x96xf32>
    %49 = arith.mulf %48, %47 : vector<8x96xf32>
    %cst_30 = arith.constant 5.000000e-01 : f32
    %50 = vector.broadcast %cst_30 : f32 to vector<8x96xf32>
    %51 = arith.addf %49, %50 : vector<8x96xf32>
    %52 = vector.extract_strided_slice %51 {offsets = [0, 0], sizes = [8, 32], strides = [1, 1]} : vector<8x96xf32> to vector<8x32xf32>
    %53 = vector.extract_strided_slice %51 {offsets = [0, 32], sizes = [8, 32], strides = [1, 1]} : vector<8x96xf32> to vector<8x32xf32>
    %54 = vector.extract_strided_slice %51 {offsets = [0, 64], sizes = [8, 32], strides = [1, 1]} : vector<8x96xf32> to vector<8x32xf32>
    %55 = vector.extract_strided_slice %46 {offsets = [0, 96], sizes = [8, 32], strides = [1, 1]} : vector<8x128xf32> to vector<8x32xf32>
    %c0_31 = arith.constant 0 : index
    %c0_32 = arith.constant 0 : index
    %56 = vector.load %arg3[%c0_31, %c0_32] : memref<8x32xf32, #tpu.memory_space<vmem>>, vector<8x32xf32>
    %57 = arith.mulf %52, %56 : vector<8x32xf32>
    %58 = arith.mulf %53, %55 : vector<8x32xf32>
    %59 = arith.addf %57, %58 : vector<8x32xf32>
    %60 = math.tanh %59 : vector<8x32xf32>
    %61 = arith.mulf %54, %60 : vector<8x32xf32>
    %c0_33 = arith.constant 0 : index
    %c0_34 = arith.constant 0 : index
    %62 = vector.load %arg13[%c0_33, %c0_34] : memref<8x32xf32, #tpu.memory_space<vmem>>, vector<8x32xf32>
    tpu.vector_store %arg13[%c0_33, %c0_34], %61 {strides = array<i32>} : memref<8x32xf32, #tpu.memory_space<vmem>>, vector<8x32xf32>,
    %c0_35 = arith.constant 0 : index
    %c0_36 = arith.constant 0 : index
    %63 = vector.load %arg14[%c0_35, %c0_36] : memref<8x32xf32, #tpu.memory_space<vmem>>, vector<8x32xf32>
    tpu.vector_store %arg14[%c0_35, %c0_36], %59 {strides = array<i32>} : memref<8x32xf32, #tpu.memory_space<vmem>>, vector<8x32xf32>,
    return
  }
  func.func @transform_0(%arg0: i32) -> (i32, i32) {
    %c0_i32 = arith.constant 0 : i32
    %c0_i32_0 = arith.constant 0 : i32
    return %arg0, %c0_i32 : i32, i32
  }
  func.func @transform_1(%arg0: i32) -> (i32, i32) {
    %c0_i32 = arith.constant 0 : i32
    %c0_i32_0 = arith.constant 0 : i32
    return %arg0, %c0_i32 : i32, i32
  }
  func.func @transform_2(%arg0: i32) -> (i32, i32) {
    %c0_i32 = arith.constant 0 : i32
    %c0_i32_0 = arith.constant 0 : i32
    return %arg0, %c0_i32 : i32, i32
  }
  func.func @transform_3(%arg0: i32) -> (i32, i32) {
    %c0_i32 = arith.constant 0 : i32
    %c0_i32_0 = arith.constant 0 : i32
    %c0_i32_1 = arith.constant 0 : i32
    return %c0_i32, %c0_i32_0 : i32, i32
  }
  func.func @transform_4(%arg0: i32) -> (i32, i32) {
    %c0_i32 = arith.constant 0 : i32
    %c0_i32_0 = arith.constant 0 : i32
    %c0_i32_1 = arith.constant 0 : i32
    return %c0_i32, %c0_i32_0 : i32, i32
  }
  func.func @transform_5(%arg0: i32) -> (i32, i32) {
    %c0_i32 = arith.constant 0 : i32
    %c0_i32_0 = arith.constant 0 : i32
    %c0_i32_1 = arith.constant 0 : i32
    return %c0_i32, %c0_i32_0 : i32, i32
  }
  func.func @transform_6(%arg0: i32) -> (i32, i32) {
    %c0_i32 = arith.constant 0 : i32
    %c0_i32_0 = arith.constant 0 : i32
    %c0_i32_1 = arith.constant 0 : i32
    return %c0_i32, %c0_i32_0 : i32, i32
  }
  func.func @transform_7(%arg0: i32) -> (i32, i32) {
    %c0_i32 = arith.constant 0 : i32
    %c0_i32_0 = arith.constant 0 : i32
    %c0_i32_1 = arith.constant 0 : i32
    return %c0_i32, %c0_i32_0 : i32, i32
  }
  func.func @transform_8(%arg0: i32) -> (i32, i32) {
    %c0_i32 = arith.constant 0 : i32
    %c0_i32_0 = arith.constant 0 : i32
    %c0_i32_1 = arith.constant 0 : i32
    return %c0_i32, %c0_i32_0 : i32, i32
  }
  func.func @transform_9(%arg0: i32) -> (i32, i32) {
    %c0_i32 = arith.constant 0 : i32
    %c0_i32_0 = arith.constant 0 : i32
    %c0_i32_1 = arith.constant 0 : i32
    return %c0_i32, %c0_i32_0 : i32, i32
  }
  func.func @transform_10(%arg0: i32) -> (i32, i32) {
    %c0_i32 = arith.constant 0 : i32
    %c0_i32_0 = arith.constant 0 : i32
    %c0_i32_1 = arith.constant 0 : i32
    return %c0_i32, %c0_i32_0 : i32, i32
  }
  func.func @transform_11(%arg0: i32) -> (i32, i32) {
    %c0_i32 = arith.constant 0 : i32
    %c0_i32_0 = arith.constant 0 : i32
    %c0_i32_1 = arith.constant 0 : i32
    return %c0_i32, %c0_i32_0 : i32, i32
  }
  func.func @transform_12(%arg0: i32) -> (i32, i32) {
    %c0_i32 = arith.constant 0 : i32
    %c0_i32_0 = arith.constant 0 : i32
    return %arg0, %c0_i32 : i32, i32
  }
  func.func @transform_13(%arg0: i32) -> (i32, i32) {
    %c0_i32 = arith.constant 0 : i32
    %c0_i32_0 = arith.constant 0 : i32
    return %arg0, %c0_i32 : i32, i32
  }
}

</mosaic_0001>

<llo_original>
// kernel: tpu_custom_call.1
$region0: #{tpu_custom_call.1}
  #allocation0 [shape = 'u32[]', space=smem, size = 0x4, offset = 0x4, fixed_abs, tag = 'smem constant byte address 0x4 - core index']
  #allocation1 [shape = 'u32[144,128]{1,0:T(1,128)}', space=vmem, size = 0x12000, scoped, tag = 'internal scratch']
  %s0 = inlined_call_operand.vmem [shape: f32[8,32], index: 0, kind: input, shape index: {}]
  %s1 = inlined_call_operand.vmem [shape: f32[8,16], index: 1, kind: input, shape index: {}]
  %s2 = inlined_call_operand.vmem [shape: f32[8,32], index: 2, kind: input, shape index: {}]
  %s3 = inlined_call_operand.vmem [shape: f32[32,4], index: 3, kind: input, shape index: {}]
  %s4 = inlined_call_operand.vmem [shape: f32[16,4], index: 4, kind: input, shape index: {}]
  %s5 = inlined_call_operand.vmem [shape: f32[1,4], index: 5, kind: input, shape index: {}]
  %s6 = inlined_call_operand.vmem [shape: f32[4,48], index: 6, kind: input, shape index: {}]
  %s7 = inlined_call_operand.vmem [shape: f32[4,48], index: 7, kind: input, shape index: {}]
  %s8 = inlined_call_operand.vmem [shape: f32[4,48], index: 8, kind: input, shape index: {}]
  %s9 = inlined_call_operand.vmem [shape: f32[1,48], index: 9, kind: input, shape index: {}]
  %s10 = inlined_call_operand.vmem [shape: f32[12,128], index: 10, kind: input, shape index: {}]
  %s11 = inlined_call_operand.vmem [shape: f32[1,128], index: 11, kind: input, shape index: {}]
  %s12 = inlined_call_operand.hbm [shape: f32[8,32], index: 12, kind: output, shape index: {0}]
  %s13 = inlined_call_operand.hbm [shape: f32[8,32], index: 13, kind: output, shape index: {1}]
  %14 = xla_tuple %s12, %s13
  %s15 = sld [smem:[#allocation0]]
  $region66: #{tpu_custom_call.1} parent=0
    _
  %s17 = ssub.s32 1, %s15
  %s18 = scalar_select 0, %s17, %s15
  $region1: #{tpu_custom_call.1} parent=0
    #allocation2 [shape = 'u8[4096]{0}', space=vmem, size = 0x1000, scoped, tag = 'output window, operand 0, single buffered']
    #allocation3 [shape = 's32[1]{0}', space=sflag, size = 0x4, scoped, tag = 'scoped memory for tpu_custom_call.1']
    #allocation4 [shape = 'u8[4096]{0}', space=vmem, size = 0x1000, scoped, tag = 'output window, operand 1, single buffered']
    #allocation5 [shape = 's32[1]{0}', space=sflag, size = 0x4, scoped, tag = 'scoped memory for tpu_custom_call.1']
    %19 = vsyncpa [#allocation3], 0
    %20 = vsyncpa [#allocation5], 0
    // Predicated region
    $region2: #{tpu_custom_call.1} parent=1 // pred_check
      _
    $region3: #{tpu_custom_call.1} parent=1 // pred_check_branch
      %22 = sbr.rel (0) target = $region5
    $region4: #{tpu_custom_call.1} parent=1 // pred_region
      _
    $region5: #{tpu_custom_call.1} parent=1 // pred_fallthru
      _
    // Predicated region
    $region6: #{tpu_custom_call.1} parent=1 // pred_check
      _
    $region7: #{tpu_custom_call.1} parent=1 // pred_check_branch
      %24 = sbr.rel (0) target = $region9
    $region8: #{tpu_custom_call.1} parent=1 // pred_region
      _
    $region9: #{tpu_custom_call.1} parent=1 // pred_fallthru
      _
    // Predicated region
    $region10: #{tpu_custom_call.1} parent=1 // pred_check
      _
    $region11: #{tpu_custom_call.1} parent=1 // pred_check_branch
      %26 = sbr.rel (0) target = $region13
    $region12: #{tpu_custom_call.1} parent=1 // pred_region
      _
    $region13: #{tpu_custom_call.1} parent=1 // pred_fallthru
      _
    // Predicated region
    $region14: #{tpu_custom_call.1} parent=1 // pred_check
      _
    $region15: #{tpu_custom_call.1} parent=1 // pred_check_branch
      %28 = sbr.rel (0) target = $region17
    $region16: #{tpu_custom_call.1} parent=1 // pred_region
      _
    $region17: #{tpu_custom_call.1} parent=1 // pred_fallthru
      _
    // Predicated region
    $region18: #{tpu_custom_call.1} parent=1 // pred_check
      _
    $region19: #{tpu_custom_call.1} parent=1 // pred_check_branch
      %30 = sbr.rel (0) target = $region21
    $region20: #{tpu_custom_call.1} parent=1 // pred_region
      _
    $region21: #{tpu_custom_call.1} parent=1 // pred_fallthru
      _
    // Predicated region
    $region22: #{tpu_custom_call.1} parent=1 // pred_check
      _
    $region23: #{tpu_custom_call.1} parent=1 // pred_check_branch
      %32 = sbr.rel (0) target = $region25
    $region24: #{tpu_custom_call.1} parent=1 // pred_region
      _
    $region25: #{tpu_custom_call.1} parent=1 // pred_fallthru
      _
    // Predicated region
    $region26: #{tpu_custom_call.1} parent=1 // pred_check
      _
    $region27: #{tpu_custom_call.1} parent=1 // pred_check_branch
      %34 = sbr.rel (0) target = $region29
    $region28: #{tpu_custom_call.1} parent=1 // pred_region
      _
    $region29: #{tpu_custom_call.1} parent=1 // pred_fallthru
      _
    // Predicated region
    $region30: #{tpu_custom_call.1} parent=1 // pred_check
      _
    $region31: #{tpu_custom_call.1} parent=1 // pred_check_branch
      %36 = sbr.rel (0) target = $region33
    $region32: #{tpu_custom_call.1} parent=1 // pred_region
      _
    $region33: #{tpu_custom_call.1} parent=1 // pred_fallthru
      _
    // Predicated region
    $region34: #{tpu_custom_call.1} parent=1 // pred_check
      _
    $region35: #{tpu_custom_call.1} parent=1 // pred_check_branch
      %38 = sbr.rel (0) target = $region37
    $region36: #{tpu_custom_call.1} parent=1 // pred_region
      _
    $region37: #{tpu_custom_call.1} parent=1 // pred_fallthru
      _
    // Predicated region
    $region38: #{tpu_custom_call.1} parent=1 // pred_check
      _
    $region39: #{tpu_custom_call.1} parent=1 // pred_check_branch
      %40 = sbr.rel (0) target = $region41
    $region40: #{tpu_custom_call.1} parent=1 // pred_region
      _
    $region41: #{tpu_custom_call.1} parent=1 // pred_fallthru
      _
    // Predicated region
    $region42: #{tpu_custom_call.1} parent=1 // pred_check
      _
    $region43: #{tpu_custom_call.1} parent=1 // pred_check_branch
      %42 = sbr.rel (0) target = $region45
    $region44: #{tpu_custom_call.1} parent=1 // pred_region
      _
    $region45: #{tpu_custom_call.1} parent=1 // pred_fallthru
      _
    // Predicated region
    $region46: #{tpu_custom_call.1} parent=1 // pred_check
      _
    $region47: #{tpu_custom_call.1} parent=1 // pred_check_branch
      %44 = sbr.rel (0) target = $region49
    $region48: #{tpu_custom_call.1} parent=1 // pred_region
      _
    $region49: #{tpu_custom_call.1} parent=1 // pred_fallthru
      _
    %v45 = vld [vmem:[%s0] sm:$0xff]
    %v46 = vld [vmem:[%s3] sm:$0xff]
    %v47 = vld [vmem:[%s3 + $0x8] sm:$0xff]
    %v48 = vld [vmem:[%s3 + $0x10] sm:$0xff]
    %v49 = vld [vmem:[%s3 + $0x18] sm:$0xff]
    %v50 = vld [vmem:[%s1] sm:$0xff]
    %v51 = vld [vmem:[%s4] sm:$0xff]
    %v52 = vld [vmem:[%s4 + $0x8] sm:$0xff]
    %vm53 = vcmask 130048
    %v55 = vsel %vm53, %v50, 0
    %57 = vmatprep.subr.mxu0 0.0
    %58 = vmatpush1.msra.mxu0 %v51
    %59 = vmatprep.subr.mxu0 0.0
    %60 = vmatpush1.msra.mxu0 %v52
    %61 = vmatprep.subr.mxu0 0.0
    %62 = vmatpush1.msra.mxu0 0.0
    %63 = vmatprep.subr.mxu0 0.0
    %64 = vmatpush1.msra.mxu0 0.0
    %65 = vmatprep.subr.mxu0 0.0
    %66 = vmatpush1.msra.mxu0 0.0
    %67 = vmatprep.subr.mxu0 0.0
    %68 = vmatpush1.msra.mxu0 0.0
    %69 = vmatprep.subr.mxu0 0.0
    %70 = vmatpush1.msra.mxu0 0.0
    %71 = vmatprep.subr.mxu0 0.0
    %72 = vmatpush1.msra.mxu0 0.0
    %73 = vmatprep.subr.mxu0 0.0
    %74 = vmatpush1.msra.mxu0 0.0
    %75 = vmatprep.subr.mxu0 0.0
    %76 = vmatpush1.msra.mxu0 0.0
    %77 = vmatprep.subr.mxu0 0.0
    %78 = vmatpush1.msra.mxu0 0.0
    %79 = vmatprep.subr.mxu0 0.0
    %80 = vmatpush1.msra.mxu0 0.0
    %81 = vmatprep.subr.mxu0 0.0
    %82 = vmatpush1.msra.mxu0 0.0
    %83 = vmatprep.subr.mxu0 0.0
    %84 = vmatpush1.msra.mxu0 0.0
    %85 = vmatprep.subr.mxu0 0.0
    %86 = vmatpush1.msra.mxu0 0.0
    %87 = vmatprep.subr.mxu0 0.0
    %88 = vmatpush1.msra.mxu0 0.0
    %89 = vmatprep.subr.mxu0 0.0
    %90 = vmatpush1.msra.mxu0 0.0
    %91 = vmatprep.subr.mxu0 0.0
    %92 = vmatpush1.msra.mxu0 0.0
    %93 = vmatprep.subr.mxu0 0.0
    %94 = vmatpush1.msra.mxu0 0.0
    %95 = vmatprep.subr.mxu0 0.0
    %96 = vmatpush1.msra.mxu0 0.0
    %97 = vmatprep.subr.mxu0 0.0
    %98 = vmatpush1.msra.mxu0 0.0
    %99 = vmatprep.subr.mxu0 0.0
    %100 = vmatpush1.msra.mxu0 0.0
    %101 = vmatprep.subr.mxu0 0.0
    %102 = vmatpush1.msra.mxu0 0.0
    %103 = vmatprep.subr.mxu0 0.0
    %104 = vmatpush1.msra.mxu0 0.0
    %105 = vmatprep.subr.mxu0 0.0
    %106 = vmatpush1.msra.mxu0 0.0
    %107 = vmatprep.subr.mxu0 0.0
    %108 = vmatpush1.msra.mxu0 0.0
    %109 = vmatprep.subr.mxu0 0.0
    %110 = vmatpush1.msra.mxu0 0.0
    %111 = vmatprep.subr.mxu0 0.0
    %112 = vmatpush1.msra.mxu0 0.0
    %113 = vmatprep.subr.mxu0 0.0
    %114 = vmatpush1.msra.mxu0 0.0
    %115 = vmatprep.subr.mxu0 0.0
    %116 = vmatpush1.msra.mxu0 0.0
    %117 = vmatprep.subr.mxu0 0.0
    %118 = vmatpush1.msra.mxu0 0.0
    %119 = vmatprep.subr.mxu0 0.0
    %120 = vmatpush1.msra.mxu0 0.0
    %121 = vmatprep.mubr.f32.mxu0 0.0
    %122 = vmatmul.mubr.f32.gmra.mrb[0].mxu0 %v55
    %v123 = vpop.f32.mrb[0].mxu0
    %v124 = vadd.f32 0.0, %v123
    %v125 = vpop.f32.mrb[0].mxu0
    %126 = vdwg.mxu0
    %vm127 = vcmask 261120
    %v129 = vsel %vm127, %v45, 0
    %131 = vmatprep.subr.mxu0 0.0
    %132 = vmatpush1.msra.mxu0 %v46
    %133 = vmatprep.subr.mxu0 0.0
    %134 = vmatpush1.msra.mxu0 %v47
    %135 = vmatprep.subr.mxu0 0.0
    %136 = vmatpush1.msra.mxu0 %v48
    %137 = vmatprep.subr.mxu0 0.0
    %138 = vmatpush1.msra.mxu0 %v49
    %139 = vmatprep.subr.mxu0 0.0
    %140 = vmatpush1.msra.mxu0 0.0
    %141 = vmatprep.subr.mxu0 0.0
    %142 = vmatpush1.msra.mxu0 0.0
    %143 = vmatprep.subr.mxu0 0.0
    %144 = vmatpush1.msra.mxu0 0.0
    %145 = vmatprep.subr.mxu0 0.0
    %146 = vmatpush1.msra.mxu0 0.0
    %147 = vmatprep.subr.mxu0 0.0
    %148 = vmatpush1.msra.mxu0 0.0
    %149 = vmatprep.subr.mxu0 0.0
    %150 = vmatpush1.msra.mxu0 0.0
    %151 = vmatprep.subr.mxu0 0.0
    %152 = vmatpush1.msra.mxu0 0.0
    %153 = vmatprep.subr.mxu0 0.0
    %154 = vmatpush1.msra.mxu0 0.0
    %155 = vmatprep.subr.mxu0 0.0
    %156 = vmatpush1.msra.mxu0 0.0
    %157 = vmatprep.subr.mxu0 0.0
    %158 = vmatpush1.msra.mxu0 0.0
    %159 = vmatprep.subr.mxu0 0.0
    %160 = vmatpush1.msra.mxu0 0.0
    %161 = vmatprep.subr.mxu0 0.0
    %162 = vmatpush1.msra.mxu0 0.0
    %163 = vmatprep.subr.mxu0 0.0
    %164 = vmatpush1.msra.mxu0 0.0
    %165 = vmatprep.subr.mxu0 0.0
    %166 = vmatpush1.msra.mxu0 0.0
    %167 = vmatprep.subr.mxu0 0.0
    %168 = vmatpush1.msra.mxu0 0.0
    %169 = vmatprep.subr.mxu0 0.0
    %170 = vmatpush1.msra.mxu0 0.0
    %171 = vmatprep.subr.mxu0 0.0
    %172 = vmatpush1.msra.mxu0 0.0
    %173 = vmatprep.subr.mxu0 0.0
    %174 = vmatpush1.msra.mxu0 0.0
    %175 = vmatprep.subr.mxu0 0.0
    %176 = vmatpush1.msra.mxu0 0.0
    %177 = vmatprep.subr.mxu0 0.0
    %178 = vmatpush1.msra.mxu0 0.0
    %179 = vmatprep.subr.mxu0 0.0
    %180 = vmatpush1.msra.mxu0 0.0
    %181 = vmatprep.subr.mxu0 0.0
    %182 = vmatpush1.msra.mxu0 0.0
    %183 = vmatprep.subr.mxu0 0.0
    %184 = vmatpush1.msra.mxu0 0.0
    %185 = vmatprep.subr.mxu0 0.0
    %186 = vmatpush1.msra.mxu0 0.0
    %187 = vmatprep.subr.mxu0 0.0
    %188 = vmatpush1.msra.mxu0 0.0
    %189 = vmatprep.subr.mxu0 0.0
    %190 = vmatpush1.msra.mxu0 0.0
    %191 = vmatprep.subr.mxu0 0.0
    %192 = vmatpush1.msra.mxu0 0.0
    %193 = vmatprep.subr.mxu0 0.0
    %194 = vmatpush1.msra.mxu0 0.0
    %195 = vmatprep.mubr.f32.mxu0 0.0
    %196 = vmatmul.mubr.f32.gmra.mrb[0].mxu0 %v129
    %v197 = vpop.f32.mrb[0].mxu0
    %v198 = vadd.f32 %v124, %v197
    %v199 = vpop.f32.mrb[0].mxu0
    %200 = vdwg.mxu0
    %v201 = vld [vmem:[%s5] sm:$0x1]
    %v203 = vlaneseq
    %v204 = vshrl.u32 %v203, 7
    %v205 = vsub.s32 0, %v204
    %v206 = vrot.slane %v201, %v205
    %v208 = vadd.f32 %v198, %v206
    %v209 = vmul.f32 %v208, %v208
    %v210 = vadd.f32 %v209, 1.0
    %v211 = vrsqrt.pop %v210
    %v212 = vmin.f32 %v209, 1e+18
    %v213 = vmul.f32 %v212, %v212
    %v214 = vadd.f32 %v213, 1.0
    %v215 = vrsqrt.pop %v214
    %v216 = vmul.f32 %v208, %v211
    %v217 = vmul.f32 %v211, %v215
    %v218 = vmul.f32 %v217, %v212
    %v219 = vld [vmem:[%s6] sm:$0xf]
    %v220 = vld [vmem:[%s7] sm:$0xf]
    %vm221 = vcmask 31744
    %v223 = vsel %vm221, %v217, 0
    %vm225 = vcmask 1043456
    %v227 = vsel %vm225, %v220, 0
    %229 = vmatprep.subr.mxu0 0.0
    %230 = vmatpush1.msra.mxu0 %v227
    %231 = vmatprep.subr.mxu0 0.0
    %232 = vmatpush1.msra.mxu0 0.0
    %233 = vmatprep.subr.mxu0 0.0
    %234 = vmatpush1.msra.mxu0 0.0
    %235 = vmatprep.subr.mxu0 0.0
    %236 = vmatpush1.msra.mxu0 0.0
    %237 = vmatprep.subr.mxu0 0.0
    %238 = vmatpush1.msra.mxu0 0.0
    %239 = vmatprep.subr.mxu0 0.0
    %240 = vmatpush1.msra.mxu0 0.0
    %241 = vmatprep.subr.mxu0 0.0
    %242 = vmatpush1.msra.mxu0 0.0
    %243 = vmatprep.subr.mxu0 0.0
    %244 = vmatpush1.msra.mxu0 0.0
    %245 = vmatprep.subr.mxu0 0.0
    %246 = vmatpush1.msra.mxu0 0.0
    %247 = vmatprep.subr.mxu0 0.0
    %248 = vmatpush1.msra.mxu0 0.0
    %249 = vmatprep.subr.mxu0 0.0
    %250 = vmatpush1.msra.mxu0 0.0
    %251 = vmatprep.subr.mxu0 0.0
    %252 = vmatpush1.msra.mxu0 0.0
    %253 = vmatprep.subr.mxu0 0.0
    %254 = vmatpush1.msra.mxu0 0.0
    %255 = vmatprep.subr.mxu0 0.0
    %256 = vmatpush1.msra.mxu0 0.0
    %257 = vmatprep.subr.mxu0 0.0
    %258 = vmatpush1.msra.mxu0 0.0
    %259 = vmatprep.subr.mxu0 0.0
    %260 = vmatpush1.msra.mxu0 0.0
    %261 = vmatprep.subr.mxu0 0.0
    %262 = vmatpush1.msra.mxu0 0.0
    %263 = vmatprep.subr.mxu0 0.0
    %264 = vmatpush1.msra.mxu0 0.0
    %265 = vmatprep.subr.mxu0 0.0
    %266 = vmatpush1.msra.mxu0 0.0
    %267 = vmatprep.subr.mxu0 0.0
    %268 = vmatpush1.msra.mxu0 0.0
    %269 = vmatprep.subr.mxu0 0.0
    %270 = vmatpush1.msra.mxu0 0.0
    %271 = vmatprep.subr.mxu0 0.0
    %272 = vmatpush1.msra.mxu0 0.0
    %273 = vmatprep.subr.mxu0 0.0
    %274 = vmatpush1.msra.mxu0 0.0
    %275 = vmatprep.subr.mxu0 0.0
    %276 = vmatpush1.msra.mxu0 0.0
    %277 = vmatprep.subr.mxu0 0.0
    %278 = vmatpush1.msra.mxu0 0.0
    %279 = vmatprep.subr.mxu0 0.0
    %280 = vmatpush1.msra.mxu0 0.0
    %281 = vmatprep.subr.mxu0 0.0
    %282 = vmatpush1.msra.mxu0 0.0
    %283 = vmatprep.subr.mxu0 0.0
    %284 = vmatpush1.msra.mxu0 0.0
    %285 = vmatprep.subr.mxu0 0.0
    %286 = vmatpush1.msra.mxu0 0.0
    %287 = vmatprep.subr.mxu0 0.0
    %288 = vmatpush1.msra.mxu0 0.0
    %289 = vmatprep.subr.mxu0 0.0
    %290 = vmatpush1.msra.mxu0 0.0
    %291 = vmatprep.subr.mxu0 0.0
    %292 = vmatpush1.msra.mxu0 0.0
    %293 = vmatprep.mubr.f32.mxu0 0.0
    %294 = vmatmul.mubr.f32.gmra.mrb[0].mxu0 %v223
    %v295 = vpop.f32.mrb[0].mxu0
    %v296 = vadd.f32 0.0, %v295
    %v297 = vpop.f32.mrb[0].mxu0
    %298 = vdwg.mxu0
    %v300 = vsel %vm221, %v216, 0
    %v303 = vsel %vm225, %v219, 0
    %305 = vmatprep.subr.mxu0 0.0
    %306 = vmatpush1.msra.mxu0 %v303
    %307 = vmatprep.subr.mxu0 0.0
    %308 = vmatpush1.msra.mxu0 0.0
    %309 = vmatprep.subr.mxu0 0.0
    %310 = vmatpush1.msra.mxu0 0.0
    %311 = vmatprep.subr.mxu0 0.0
    %312 = vmatpush1.msra.mxu0 0.0
    %313 = vmatprep.subr.mxu0 0.0
    %314 = vmatpush1.msra.mxu0 0.0
    %315 = vmatprep.subr.mxu0 0.0
    %316 = vmatpush1.msra.mxu0 0.0
    %317 = vmatprep.subr.mxu0 0.0
    %318 = vmatpush1.msra.mxu0 0.0
    %319 = vmatprep.subr.mxu0 0.0
    %320 = vmatpush1.msra.mxu0 0.0
    %321 = vmatprep.subr.mxu0 0.0
    %322 = vmatpush1.msra.mxu0 0.0
    %323 = vmatprep.subr.mxu0 0.0
    %324 = vmatpush1.msra.mxu0 0.0
    %325 = vmatprep.subr.mxu0 0.0
    %326 = vmatpush1.msra.mxu0 0.0
    %327 = vmatprep.subr.mxu0 0.0
    %328 = vmatpush1.msra.mxu0 0.0
    %329 = vmatprep.subr.mxu0 0.0
    %330 = vmatpush1.msra.mxu0 0.0
    %331 = vmatprep.subr.mxu0 0.0
    %332 = vmatpush1.msra.mxu0 0.0
    %333 = vmatprep.subr.mxu0 0.0
    %334 = vmatpush1.msra.mxu0 0.0
    %335 = vmatprep.subr.mxu0 0.0
    %336 = vmatpush1.msra.mxu0 0.0
    %337 = vmatprep.subr.mxu0 0.0
    %338 = vmatpush1.msra.mxu0 0.0
    %339 = vmatprep.subr.mxu0 0.0
    %340 = vmatpush1.msra.mxu0 0.0
    %341 = vmatprep.subr.mxu0 0.0
    %342 = vmatpush1.msra.mxu0 0.0
    %343 = vmatprep.subr.mxu0 0.0
    %344 = vmatpush1.msra.mxu0 0.0
    %345 = vmatprep.subr.mxu0 0.0
    %346 = vmatpush1.msra.mxu0 0.0
    %347 = vmatprep.subr.mxu0 0.0
    %348 = vmatpush1.msra.mxu0 0.0
    %349 = vmatprep.subr.mxu0 0.0
    %350 = vmatpush1.msra.mxu0 0.0
    %351 = vmatprep.subr.mxu0 0.0
    %352 = vmatpush1.msra.mxu0 0.0
    %353 = vmatprep.subr.mxu0 0.0
    %354 = vmatpush1.msra.mxu0 0.0
    %355 = vmatprep.subr.mxu0 0.0
    %356 = vmatpush1.msra.mxu0 0.0
    %357 = vmatprep.subr.mxu0 0.0
    %358 = vmatpush1.msra.mxu0 0.0
    %359 = vmatprep.subr.mxu0 0.0
    %360 = vmatpush1.msra.mxu0 0.0
    %361 = vmatprep.subr.mxu0 0.0
    %362 = vmatpush1.msra.mxu0 0.0
    %363 = vmatprep.subr.mxu0 0.0
    %364 = vmatpush1.msra.mxu0 0.0
    %365 = vmatprep.subr.mxu0 0.0
    %366 = vmatpush1.msra.mxu0 0.0
    %367 = vmatprep.subr.mxu0 0.0
    %368 = vmatpush1.msra.mxu0 0.0
    %369 = vmatprep.mubr.f32.mxu0 0.0
    %370 = vmatmul.mubr.f32.gmra.mrb[0].mxu0 %v300
    %v371 = vpop.f32.mrb[0].mxu0
    %v372 = vadd.f32 %v296, %v371
    %v373 = vpop.f32.mrb[0].mxu0
    %374 = vdwg.mxu0
    %v375 = vld [vmem:[%s8] sm:$0xf]
    %v377 = vsel %vm221, %v218, 0
    %v380 = vsel %vm225, %v375, 0
    %382 = vmatprep.subr.mxu0 0.0
    %383 = vmatpush1.msra.mxu0 %v380
    %384 = vmatprep.subr.mxu0 0.0
    %385 = vmatpush1.msra.mxu0 0.0
    %386 = vmatprep.subr.mxu0 0.0
    %387 = vmatpush1.msra.mxu0 0.0
    %388 = vmatprep.subr.mxu0 0.0
    %389 = vmatpush1.msra.mxu0 0.0
    %390 = vmatprep.subr.mxu0 0.0
    %391 = vmatpush1.msra.mxu0 0.0
    %392 = vmatprep.subr.mxu0 0.0
    %393 = vmatpush1.msra.mxu0 0.0
    %394 = vmatprep.subr.mxu0 0.0
    %395 = vmatpush1.msra.mxu0 0.0
    %396 = vmatprep.subr.mxu0 0.0
    %397 = vmatpush1.msra.mxu0 0.0
    %398 = vmatprep.subr.mxu0 0.0
    %399 = vmatpush1.msra.mxu0 0.0
    %400 = vmatprep.subr.mxu0 0.0
    %401 = vmatpush1.msra.mxu0 0.0
    %402 = vmatprep.subr.mxu0 0.0
    %403 = vmatpush1.msra.mxu0 0.0
    %404 = vmatprep.subr.mxu0 0.0
    %405 = vmatpush1.msra.mxu0 0.0
    %406 = vmatprep.subr.mxu0 0.0
    %407 = vmatpush1.msra.mxu0 0.0
    %408 = vmatprep.subr.mxu0 0.0
    %409 = vmatpush1.msra.mxu0 0.0
    %410 = vmatprep.subr.mxu0 0.0
    %411 = vmatpush1.msra.mxu0 0.0
    %412 = vmatprep.subr.mxu0 0.0
    %413 = vmatpush1.msra.mxu0 0.0
    %414 = vmatprep.subr.mxu0 0.0
    %415 = vmatpush1.msra.mxu0 0.0
    %416 = vmatprep.subr.mxu0 0.0
    %417 = vmatpush1.msra.mxu0 0.0
    %418 = vmatprep.subr.mxu0 0.0
    %419 = vmatpush1.msra.mxu0 0.0
    %420 = vmatprep.subr.mxu0 0.0
    %421 = vmatpush1.msra.mxu0 0.0
    %422 = vmatprep.subr.mxu0 0.0
    %423 = vmatpush1.msra.mxu0 0.0
    %424 = vmatprep.subr.mxu0 0.0
    %425 = vmatpush1.msra.mxu0 0.0
    %426 = vmatprep.subr.mxu0 0.0
    %427 = vmatpush1.msra.mxu0 0.0
    %428 = vmatprep.subr.mxu0 0.0
    %429 = vmatpush1.msra.mxu0 0.0
    %430 = vmatprep.subr.mxu0 0.0
    %431 = vmatpush1.msra.mxu0 0.0
    %432 = vmatprep.subr.mxu0 0.0
    %433 = vmatpush1.msra.mxu0 0.0
    %434 = vmatprep.subr.mxu0 0.0
    %435 = vmatpush1.msra.mxu0 0.0
    %436 = vmatprep.subr.mxu0 0.0
    %437 = vmatpush1.msra.mxu0 0.0
    %438 = vmatprep.subr.mxu0 0.0
    %439 = vmatpush1.msra.mxu0 0.0
    %440 = vmatprep.subr.mxu0 0.0
    %441 = vmatpush1.msra.mxu0 0.0
    %442 = vmatprep.subr.mxu0 0.0
    %443 = vmatpush1.msra.mxu0 0.0
    %444 = vmatprep.subr.mxu0 0.0
    %445 = vmatpush1.msra.mxu0 0.0
    %446 = vmatprep.mubr.f32.mxu0 0.0
    %447 = vmatmul.mubr.f32.gmra.mrb[0].mxu0 %v377
    %v448 = vpop.f32.mrb[0].mxu0
    %v449 = vadd.f32 0.0, %v448
    %v450 = vpop.f32.mrb[0].mxu0
    %451 = vdwg.mxu0
    %v452 = vadd.f32 %v372, %v449
    %v453 = vld [vmem:[%s9] sm:$0x1]
    %v455 = vlaneseq
    %v456 = vshrl.u32 %v455, 7
    %v457 = vsub.s32 0, %v456
    %v458 = vrot.slane %v453, %v457
    %v460 = vadd.f32 %v452, %v458
    %462 = vrot.lane.b32.xlu0 %v460, 116
    %v463 = vpop.permute.xlu0 %462
    %v465 = vmul.f32 %v460, %v463
    %467 = vrot.lane.b32.xlu0 %v465, 104
    %v468 = vpop.permute.xlu0 %467
    %v470 = vmul.f32 %v465, %v468
    %v471 = vld [vmem:[%s10] sm:$0xff]
    %v472 = vld [vmem:[%s10 + $0x8] sm:$0xf]
    %v473 = vld [vmem:[%s11] sm:$0x1]
    %v475 = vlaneseq
    %v476 = vshrl.u32 %v475, 7
    %v477 = vsub.s32 0, %v476
    %v478 = vrot.slane %v473, %v477
    %vm480 = vcmask 97280
    %v482 = vsel %vm480, %v470, 0
    %v485 = vsel %vm225, %v472, 0
    %487 = vmatprep.subr.mxu0 0.0
    %488 = vmatpush1.msra.mxu0 %v471
    %489 = vmatprep.subr.mxu0 0.0
    %490 = vmatpush1.msra.mxu0 %v485
    %491 = vmatprep.subr.mxu0 0.0
    %492 = vmatpush1.msra.mxu0 0.0
    %493 = vmatprep.subr.mxu0 0.0
    %494 = vmatpush1.msra.mxu0 0.0
    %495 = vmatprep.subr.mxu0 0.0
    %496 = vmatpush1.msra.mxu0 0.0
    %497 = vmatprep.subr.mxu0 0.0
    %498 = vmatpush1.msra.mxu0 0.0
    %499 = vmatprep.subr.mxu0 0.0
    %500 = vmatpush1.msra.mxu0 0.0
    %501 = vmatprep.subr.mxu0 0.0
    %502 = vmatpush1.msra.mxu0 0.0
    %503 = vmatprep.subr.mxu0 0.0
    %504 = vmatpush1.msra.mxu0 0.0
    %505 = vmatprep.subr.mxu0 0.0
    %506 = vmatpush1.msra.mxu0 0.0
    %507 = vmatprep.subr.mxu0 0.0
    %508 = vmatpush1.msra.mxu0 0.0
    %509 = vmatprep.subr.mxu0 0.0
    %510 = vmatpush1.msra.mxu0 0.0
    %511 = vmatprep.subr.mxu0 0.0
    %512 = vmatpush1.msra.mxu0 0.0
    %513 = vmatprep.subr.mxu0 0.0
    %514 = vmatpush1.msra.mxu0 0.0
    %515 = vmatprep.subr.mxu0 0.0
    %516 = vmatpush1.msra.mxu0 0.0
    %517 = vmatprep.subr.mxu0 0.0
    %518 = vmatpush1.msra.mxu0 0.0
    %519 = vmatprep.subr.mxu0 0.0
    %520 = vmatpush1.msra.mxu0 0.0
    %521 = vmatprep.subr.mxu0 0.0
    %522 = vmatpush1.msra.mxu0 0.0
    %523 = vmatprep.subr.mxu0 0.0
    %524 = vmatpush1.msra.mxu0 0.0
    %525 = vmatprep.subr.mxu0 0.0
    %526 = vmatpush1.msra.mxu0 0.0
    %527 = vmatprep.subr.mxu0 0.0
    %528 = vmatpush1.msra.mxu0 0.0
    %529 = vmatprep.subr.mxu0 0.0
    %530 = vmatpush1.msra.mxu0 0.0
    %531 = vmatprep.subr.mxu0 0.0
    %532 = vmatpush1.msra.mxu0 0.0
    %533 = vmatprep.subr.mxu0 0.0
    %534 = vmatpush1.msra.mxu0 0.0
    %535 = vmatprep.subr.mxu0 0.0
    %536 = vmatpush1.msra.mxu0 0.0
    %537 = vmatprep.subr.mxu0 0.0
    %538 = vmatpush1.msra.mxu0 0.0
    %539 = vmatprep.subr.mxu0 0.0
    %540 = vmatpush1.msra.mxu0 0.0
    %541 = vmatprep.subr.mxu0 0.0
    %542 = vmatpush1.msra.mxu0 0.0
    %543 = vmatprep.subr.mxu0 0.0
    %544 = vmatpush1.msra.mxu0 0.0
    %545 = vmatprep.subr.mxu0 0.0
    %546 = vmatpush1.msra.mxu0 0.0
    %547 = vmatprep.subr.mxu0 0.0
    %548 = vmatpush1.msra.mxu0 0.0
    %549 = vmatprep.subr.mxu0 0.0
    %550 = vmatpush1.msra.mxu0 0.0
    %551 = vmatprep.mubr.f32.mxu0 0.0
    %552 = vmatmul.mubr.f32.gmra.mrb[0].mxu0 %v482
    %v553 = vpop.f32.mrb[0].mxu0
    %v554 = vadd.f32 %v478, %v553
    %v555 = vpop.f32.mrb[0].mxu0
    %556 = vdwg.mxu0
    %v557 = vtanh.pop %v554
    %v558 = vmul.f32 %v557, 0.5
    %v559 = vadd.f32 %v558, 0.5
    %v560 = vld [vmem:[%s2] sm:$0xff]
    %v561 = vmul.f32 %v559, %v560
    %563 = vrot.lane.b32.xlu0 %v557, 64
    %v564 = vpop.permute.xlu0 %563
    %v566 = vmul.f32 %v559, %v564
    %568 = vrot.lane.b32.xlu0 %v566, 96
    %v569 = vpop.permute.xlu0 %568
    %v571 = vadd.f32 %v561, %v569
    %v572 = vtanh.pop %v571
    %574 = vrot.lane.b32.xlu0 %v572, 64
    %v575 = vpop.permute.xlu0 %574
    %v577 = vmul.f32 %v559, %v575
    %579 = vrot.lane.b32.xlu0 %v577, 64
    %v580 = vpop.permute.xlu0 %579
    %582 = vst.msk [vmem:[#allocation2] sm:$0xff] %vm127, %v580
    %583 = vst.msk [vmem:[#allocation4] sm:$0xff] %vm127, %v571
    // Predicated region
    $region50: #{tpu_custom_call.1} parent=1 // pred_check
      _
    $region51: #{tpu_custom_call.1} parent=1 // pred_check_branch
      %585 = sbr.rel (0) target = $region53
    $region52: #{tpu_custom_call.1} parent=1 // pred_region
      %s587 = ssub.s32 128, 128
      %588 = vsyncadd [#allocation3], %s587
      %s590 = sshll.u32 [#allocation2], 4
      %s591 = int_to_ptr.vmem [resolvable:$true] %s590
      %593 = dma.vmem_to_hbm [thread:$0]  %s591, 128, %s12, [#allocation3]
    $region53: #{tpu_custom_call.1} parent=1 // pred_fallthru
      _
    // Predicated region
    $region54: #{tpu_custom_call.1} parent=1 // pred_check
      _
    $region55: #{tpu_custom_call.1} parent=1 // pred_check_branch
      %595 = sbr.rel (0) target = $region57
    $region56: #{tpu_custom_call.1} parent=1 // pred_region
      %s597 = ssub.s32 128, 128
      %598 = vsyncadd [#allocation5], %s597
      %s600 = sshll.u32 [#allocation4], 4
      %s601 = int_to_ptr.vmem [resolvable:$true] %s600
      %603 = dma.vmem_to_hbm [thread:$0]  %s601, 128, %s13, [#allocation5]
    $region57: #{tpu_custom_call.1} parent=1 // pred_fallthru
      _
    // Predicated region
    $region58: #{tpu_custom_call.1} parent=1 // pred_check
      _
    $region59: #{tpu_custom_call.1} parent=1 // pred_check_branch
      %605 = sbr.rel (0) target = $region61
    $region60: #{tpu_custom_call.1} parent=1 // pred_region
      %606 = dma.done [#allocation3], 128
    $region61: #{tpu_custom_call.1} parent=1 // pred_fallthru
      _
    // Predicated region
    $region62: #{tpu_custom_call.1} parent=1 // pred_check
      _
    $region63: #{tpu_custom_call.1} parent=1 // pred_check_branch
      %608 = sbr.rel (0) target = $region65
    $region64: #{tpu_custom_call.1} parent=1 // pred_region
      %609 = dma.done [#allocation5], 128
    $region65: #{tpu_custom_call.1} parent=1 // pred_fallthru
      _
    %610 = vsyncpa [#allocation3], 1
    %611 = vsyncpa [#allocation5], 1

</llo_original>
